<compile_context>
chip_gen: v7x
topology: tpu7x:2x2x1
jax: 0.10.0
libtpu: 0.0.40
codegen_flags: <defaults>
</compile_context>

<pallas_src>
import functools

import jax
import jax.numpy as jnp
from jax.experimental import pallas as pl
from jax.experimental.pallas import tpu as pltpu

EPS = 1e-5
LANES = 128
TARGET_BLOCK_BYTES = 1 << 20      # ~1 MiB per input block (per-step DMA well past the ~512 KiB knee)


def _sigmoid_f32(x):
    # logistic via a single EUP tanh (cheaper than exp + reciprocal)
    x = x.astype(jnp.float32)
    return 0.5 * (jnp.tanh(0.5 * x) + 1.0)


def _partial_sums_kernel(nseg_ref, nmask_ref, oseg_ref, omask_ref, out_ref,
                         *, tile_rows, valid_last, mask_last):
    """Accumulates six per-(sublane,lane) partial-sum slabs into a resident (48,128) output.

    Rows  0.. 7: sum(sigmoid(new_seg) * new_mask)
    Rows  8..15: sum(sigmoid(new_seg))
    Rows 16..23: sum(new_mask)
    Rows 24..31: sum(sigmoid(old_seg) * old_mask)
    Rows 32..39: sum(sigmoid(old_seg))
    Rows 40..47: sum(old_mask)
    """
    i = pl.program_id(0)

    @pl.when(i == 0)
    def _init():
        out_ref[...] = jnp.zeros_like(out_ref)

    def accumulate(valid_rows):
        ns = _sigmoid_f32(nseg_ref[...])
        nm = nmask_ref[...].astype(jnp.float32)
        og = _sigmoid_f32(oseg_ref[...])
        om = omask_ref[...].astype(jnp.float32)

        if valid_rows is not None:
            # Partial edge block: rows >= valid_rows hold undefined VMEM (possibly NaN).
            # Use where-select (not multiply-by-zero) so garbage is dropped, not propagated.
            row = jax.lax.broadcasted_iota(jnp.int32, (tile_rows, LANES), 0)
            keep = row < valid_rows
            ns = jnp.where(keep, ns, 0.0)
            nm = jnp.where(keep, nm, 0.0)
            og = jnp.where(keep, og, 0.0)
            om = jnp.where(keep, om, 0.0)

        def fold(x):
            # (t,128) -> (t//8, 8, 128) is a layout-preserving split of the sublane-block dim;
            # the axis-0 reduce is a chain of full-vreg VPU adds (no XLU work in the hot loop).
            return jnp.sum(x.reshape(tile_rows // 8, 8, LANES), axis=0)

        out_ref[pl.ds(0, 8), :] += fold(ns * nm)
        out_ref[pl.ds(8, 8), :] += fold(ns)
        out_ref[pl.ds(16, 8), :] += fold(nm)
        out_ref[pl.ds(24, 8), :] += fold(og * om)
        out_ref[pl.ds(32, 8), :] += fold(og)
        out_ref[pl.ds(40, 8), :] += fold(om)

    if mask_last:
        last = pl.num_programs(0) - 1

        @pl.when(i < last)
        def _fast():
            accumulate(None)

        @pl.when(i == last)
        def _tail():
            accumulate(valid_last)
    else:
        accumulate(None)


def strict_consistency_loss(new_mask, old_mask, new_seg, old_seg, iou_weight=None):
    """Matches StrictConsistencyLoss.forward (the `adaptive` flag is unused in forward)."""
    n = int(new_seg.size)
    assert new_mask.size == n and old_seg.size == n and old_mask.size == n, \
        "all four tensors must have the same number of elements"

    ns_f = new_seg.reshape(-1)
    nm_f = new_mask.reshape(-1)
    os_f = old_seg.reshape(-1)
    om_f = old_mask.reshape(-1)

    rows = n // LANES
    aligned = rows * LANES              # 128-aligned prefix handled by the kernel (zero-copy)
    tail = n - aligned                  # < 128 leftover elements handled in the JAX epilogue

    if rows > 0:
        itemsize = max(x.dtype.itemsize for x in (ns_f, nm_f, os_f, om_f))
        cap = max(8, (TARGET_BLOCK_BYTES // (LANES * itemsize)) // 8 * 8)   # 2048 f32 / 4096 bf16
        t = min(cap, ((rows + 7) // 8) * 8)                                 # multiple of 8 sublanes
        nsteps = pl.cdiv(rows, t)
        valid_last = rows - (nsteps - 1) * t      # valid rows in the final (possibly partial) block
        mask_last = (valid_last != t)             # static: aligned inputs get the pure fast path

        def as2d(x):
            return x[:aligned].reshape(rows, LANES)   # zero-copy, native dtype

        blk = pl.BlockSpec((t, LANES), lambda i: (i, 0))

        partials = pl.pallas_call(
            functools.partial(_partial_sums_kernel,
                              tile_rows=t, valid_last=valid_last, mask_last=mask_last),
            out_shape=jax.ShapeDtypeStruct((48, LANES), jnp.float32),
            grid_spec=pltpu.PrefetchScalarGridSpec(
                num_scalar_prefetch=0,
                grid=(nsteps,),
                in_specs=[blk, blk, blk, blk],
                out_specs=pl.BlockSpec((48, LANES), lambda i: (0, 0)),
            ),
            compiler_params=pltpu.CompilerParams(
                dimension_semantics=("arbitrary",),
                vmem_limit_bytes=32 * 1024 * 1024),
        )(as2d(ns_f), as2d(nm_f), as2d(os_f), as2d(om_f))

        sums = jnp.sum(partials.reshape(6, 8 * LANES), axis=1)    # (6,) f32
    else:
        sums = jnp.zeros((6,), jnp.float32)

    if tail:
        # < 128 elements: trivial plain-JAX contribution (avoids a full jnp.pad copy of the inputs).
        tns = _sigmoid_f32(ns_f[aligned:])
        tnm = nm_f[aligned:].astype(jnp.float32)
        tos = _sigmoid_f32(os_f[aligned:])
        tom = om_f[aligned:].astype(jnp.float32)
        sums = sums + jnp.stack([jnp.sum(tns * tnm), jnp.sum(tns), jnp.sum(tnm),
                                 jnp.sum(tos * tom), jnp.sum(tos), jnp.sum(tom)])

    inter_n, pred_n, targ_n = sums[0], sums[1], sums[2]
    inter_o, pred_o, targ_o = sums[3], sums[4], sums[5]
    jac_new = 1.0 - (inter_n + EPS) / (pred_n + targ_n - inter_n + EPS)
    jac_old = 1.0 - (inter_o + EPS) / (pred_o + targ_o - inter_o + EPS)

    w = 0.5 if iou_weight is None else iou_weight
    return w * jac_new + (1.0 - w) * jac_old


def _reference(new_mask, old_mask, new_seg, old_seg, iou_weight=None):
    def jaccard(seg, mask):
        p = jax.nn.sigmoid(seg.astype(jnp.float32)).reshape(-1)
        t = mask.astype(jnp.float32).reshape(-1)
        inter = jnp.sum(p * t)
        union = jnp.sum(p) + jnp.sum(t) - inter
        return 1.0 - (inter + EPS) / (union + EPS)

    w = 0.5 if iou_weight is None else iou_weight
    return w * jaccard(new_seg, new_mask) + (1.0 - w) * jaccard(old_seg, old_mask)


if __name__ == "__main__":
    key = jax.random.PRNGKey(0)

    def make(shape, seed, dtype=jnp.float32):
        k1, k2, k3, k4 = jax.random.split(jax.random.fold_in(key, seed), 4)
        new_seg = jax.random.normal(k1, shape, dtype=jnp.float32).astype(dtype)   # logits
        old_seg = jax.random.normal(k2, shape, dtype=jnp.float32).astype(dtype)   # logits
        new_mask = (jax.random.uniform(k3, shape) > 0.5).astype(dtype)
        old_mask = (jax.random.uniform(k4, shape) > 0.5).astype(dtype)
        return new_mask, old_mask, new_seg, old_seg

    def check(args, iou_weight=None):
        out = strict_consistency_loss(*args, iou_weight=iou_weight)
        jax.block_until_ready(out)
        ref = _reference(*args, iou_weight=iou_weight)
        assert jnp.allclose(out, ref, rtol=1e-4, atol=1e-5), (out, ref)

    # 1) canonical small NCHW shape, default 0.5/0.5 weighting (16 aligned rows, no-mask fast path)
    args = make((2, 4, 16, 16), 0)
    check(args)
    # explicit iou_weight branch
    check(args, iou_weight=0.3)

    # 2) ragged size: 210 elements -> 1 kernel row (8-row edge block mask) + 82-element JAX tail
    check(make((2, 3, 7, 5), 1))

    # 3) multi-block path: 332800 elements -> 2600 rows, 2 steps, masked partial last block
    check(make((2, 4, 160, 260), 2))

    # 4) native bf16 inputs (no wrapper upcast; f32 accumulation in-kernel)
    check(make((2, 4, 16, 16), 3, dtype=jnp.bfloat16))

    print("KERNEL_OK")
</pallas_src>

<mosaic_0001>
module attributes {stable_mosaic.version = 11 : i64} {
  func.func @_partial_sums_kernel(%arg0: i32, %arg1: memref<16x128xf32, #tpu.memory_space<vmem>>, %arg2: memref<16x128xf32, #tpu.memory_space<vmem>>, %arg3: memref<16x128xf32, #tpu.memory_space<vmem>>, %arg4: memref<16x128xf32, #tpu.memory_space<vmem>>, %arg5: memref<48x128xf32, #tpu.memory_space<vmem>>) attributes {dimension_semantics = [#tpu.dimension_semantics<arbitrary>], iteration_bounds = array<i64: 1>, scalar_prefetch = 0 : i64, scratch_operands = 0 : i64, tpu.core_type = #tpu.core_type<tc>, window_params = [{transform_indices = @transform_0, window_bounds = array<i64: 16, 128>}, {transform_indices = @transform_1, window_bounds = array<i64: 16, 128>}, {transform_indices = @transform_2, window_bounds = array<i64: 16, 128>}, {transform_indices = @transform_3, window_bounds = array<i64: 16, 128>}, {pipeline_mode = #tpu.pipeline_mode<synchronous>, transform_indices = @transform_4, window_bounds = array<i64: 48, 128>}]} {
    %c0_i32 = arith.constant 0 : i32
    %0 = arith.cmpi eq, %arg0, %c0_i32 : i32
    %1 = arith.extui %0 : i1 to i32
    %c0_i32_0 = arith.constant 0 : i32
    %2 = arith.cmpi ne, %1, %c0_i32_0 : i32
    scf.if %2 {
      %cst_38 = arith.constant 0.000000e+00 : f32
      %53 = vector.broadcast %cst_38 : f32 to vector<48x128xf32>
      %c0_39 = arith.constant 0 : index
      %c0_40 = arith.constant 0 : index
      %54 = vector.load %arg5[%c0_39, %c0_40] : memref<48x128xf32, #tpu.memory_space<vmem>>, vector<48x128xf32>
      tpu.vector_store %arg5[%c0_39, %c0_40], %53 {strides = array<i32>} : memref<48x128xf32, #tpu.memory_space<vmem>>, vector<48x128xf32>,
    } else {
    }
    %c0 = arith.constant 0 : index
    %c0_1 = arith.constant 0 : index
    %3 = vector.load %arg1[%c0, %c0_1] : memref<16x128xf32, #tpu.memory_space<vmem>>, vector<16x128xf32>
    %cst = arith.constant 5.000000e-01 : f32
    %4 = vector.broadcast %cst : f32 to vector<16x128xf32>
    %5 = arith.mulf %4, %3 : vector<16x128xf32>
    %6 = math.tanh %5 : vector<16x128xf32>
    %cst_2 = arith.constant 1.000000e+00 : f32
    %7 = vector.broadcast %cst_2 : f32 to vector<16x128xf32>
    %8 = arith.addf %6, %7 : vector<16x128xf32>
    %cst_3 = arith.constant 5.000000e-01 : f32
    %9 = vector.broadcast %cst_3 : f32 to vector<16x128xf32>
    %10 = arith.mulf %9, %8 : vector<16x128xf32>
    %c0_4 = arith.constant 0 : index
    %c0_5 = arith.constant 0 : index
    %11 = vector.load %arg2[%c0_4, %c0_5] : memref<16x128xf32, #tpu.memory_space<vmem>>, vector<16x128xf32>
    %c0_6 = arith.constant 0 : index
    %c0_7 = arith.constant 0 : index
    %12 = vector.load %arg3[%c0_6, %c0_7] : memref<16x128xf32, #tpu.memory_space<vmem>>, vector<16x128xf32>
    %cst_8 = arith.constant 5.000000e-01 : f32
    %13 = vector.broadcast %cst_8 : f32 to vector<16x128xf32>
    %14 = arith.mulf %13, %12 : vector<16x128xf32>
    %15 = math.tanh %14 : vector<16x128xf32>
    %cst_9 = arith.constant 1.000000e+00 : f32
    %16 = vector.broadcast %cst_9 : f32 to vector<16x128xf32>
    %17 = arith.addf %15, %16 : vector<16x128xf32>
    %cst_10 = arith.constant 5.000000e-01 : f32
    %18 = vector.broadcast %cst_10 : f32 to vector<16x128xf32>
    %19 = arith.mulf %18, %17 : vector<16x128xf32>
    %c0_11 = arith.constant 0 : index
    %c0_12 = arith.constant 0 : index
    %20 = vector.load %arg4[%c0_11, %c0_12] : memref<16x128xf32, #tpu.memory_space<vmem>>, vector<16x128xf32>
    %c0_13 = arith.constant 0 : index
    %c0_14 = arith.constant 0 : index
    %21 = vector.load %arg5[%c0_13, %c0_14] : memref<48x128xf32, #tpu.memory_space<vmem>>, vector<8x128xf32>
    %22 = arith.mulf %10, %11 : vector<16x128xf32>
    %23 = vector.shape_cast %22 : vector<16x128xf32> to vector<2x8x128xf32>
    %cst_15 = arith.constant dense<0.000000e+00> : vector<8x128xf32>
    %24 = vector.multi_reduction <add>, %23, %cst_15 [0] : vector<2x8x128xf32> to vector<8x128xf32>
    %25 = arith.addf %21, %24 : vector<8x128xf32>
    %c0_16 = arith.constant 0 : index
    %c0_17 = arith.constant 0 : index
    %26 = vector.load %arg5[%c0_16, %c0_17] : memref<48x128xf32, #tpu.memory_space<vmem>>, vector<8x128xf32>
    tpu.vector_store %arg5[%c0_16, %c0_17], %25 {strides = array<i32>} : memref<48x128xf32, #tpu.memory_space<vmem>>, vector<8x128xf32>,
    %c8 = arith.constant 8 : index
    %c0_18 = arith.constant 0 : index
    %27 = vector.load %arg5[%c8, %c0_18] : memref<48x128xf32, #tpu.memory_space<vmem>>, vector<8x128xf32>
    %28 = vector.shape_cast %10 : vector<16x128xf32> to vector<2x8x128xf32>
    %cst_19 = arith.constant dense<0.000000e+00> : vector<8x128xf32>
    %29 = vector.multi_reduction <add>, %28, %cst_19 [0] : vector<2x8x128xf32> to vector<8x128xf32>
    %30 = arith.addf %27, %29 : vector<8x128xf32>
    %c8_20 = arith.constant 8 : index
    %c0_21 = arith.constant 0 : index
    %31 = vector.load %arg5[%c8_20, %c0_21] : memref<48x128xf32, #tpu.memory_space<vmem>>, vector<8x128xf32>
    tpu.vector_store %arg5[%c8_20, %c0_21], %30 {strides = array<i32>} : memref<48x128xf32, #tpu.memory_space<vmem>>, vector<8x128xf32>,
    %c16 = arith.constant 16 : index
    %c0_22 = arith.constant 0 : index
    %32 = vector.load %arg5[%c16, %c0_22] : memref<48x128xf32, #tpu.memory_space<vmem>>, vector<8x128xf32>
    %33 = vector.shape_cast %11 : vector<16x128xf32> to vector<2x8x128xf32>
    %cst_23 = arith.constant dense<0.000000e+00> : vector<8x128xf32>
    %34 = vector.multi_reduction <add>, %33, %cst_23 [0] : vector<2x8x128xf32> to vector<8x128xf32>
    %35 = arith.addf %32, %34 : vector<8x128xf32>
    %c16_24 = arith.constant 16 : index
    %c0_25 = arith.constant 0 : index
    %36 = vector.load %arg5[%c16_24, %c0_25] : memref<48x128xf32, #tpu.memory_space<vmem>>, vector<8x128xf32>
    tpu.vector_store %arg5[%c16_24, %c0_25], %35 {strides = array<i32>} : memref<48x128xf32, #tpu.memory_space<vmem>>, vector<8x128xf32>,
    %c24 = arith.constant 24 : index
    %c0_26 = arith.constant 0 : index
    %37 = vector.load %arg5[%c24, %c0_26] : memref<48x128xf32, #tpu.memory_space<vmem>>, vector<8x128xf32>
    %38 = arith.mulf %19, %20 : vector<16x128xf32>
    %39 = vector.shape_cast %38 : vector<16x128xf32> to vector<2x8x128xf32>
    %cst_27 = arith.constant dense<0.000000e+00> : vector<8x128xf32>
    %40 = vector.multi_reduction <add>, %39, %cst_27 [0] : vector<2x8x128xf32> to vector<8x128xf32>
    %41 = arith.addf %37, %40 : vector<8x128xf32>
    %c24_28 = arith.constant 24 : index
    %c0_29 = arith.constant 0 : index
    %42 = vector.load %arg5[%c24_28, %c0_29] : memref<48x128xf32, #tpu.memory_space<vmem>>, vector<8x128xf32>
    tpu.vector_store %arg5[%c24_28, %c0_29], %41 {strides = array<i32>} : memref<48x128xf32, #tpu.memory_space<vmem>>, vector<8x128xf32>,
    %c32 = arith.constant 32 : index
    %c0_30 = arith.constant 0 : index
    %43 = vector.load %arg5[%c32, %c0_30] : memref<48x128xf32, #tpu.memory_space<vmem>>, vector<8x128xf32>
    %44 = vector.shape_cast %19 : vector<16x128xf32> to vector<2x8x128xf32>
    %cst_31 = arith.constant dense<0.000000e+00> : vector<8x128xf32>
    %45 = vector.multi_reduction <add>, %44, %cst_31 [0] : vector<2x8x128xf32> to vector<8x128xf32>
    %46 = arith.addf %43, %45 : vector<8x128xf32>
    %c32_32 = arith.constant 32 : index
    %c0_33 = arith.constant 0 : index
    %47 = vector.load %arg5[%c32_32, %c0_33] : memref<48x128xf32, #tpu.memory_space<vmem>>, vector<8x128xf32>
    tpu.vector_store %arg5[%c32_32, %c0_33], %46 {strides = array<i32>} : memref<48x128xf32, #tpu.memory_space<vmem>>, vector<8x128xf32>,
    %c40 = arith.constant 40 : index
    %c0_34 = arith.constant 0 : index
    %48 = vector.load %arg5[%c40, %c0_34] : memref<48x128xf32, #tpu.memory_space<vmem>>, vector<8x128xf32>
    %49 = vector.shape_cast %20 : vector<16x128xf32> to vector<2x8x128xf32>
    %cst_35 = arith.constant dense<0.000000e+00> : vector<8x128xf32>
    %50 = vector.multi_reduction <add>, %49, %cst_35 [0] : vector<2x8x128xf32> to vector<8x128xf32>
    %51 = arith.addf %48, %50 : vector<8x128xf32>
    %c40_36 = arith.constant 40 : index
    %c0_37 = arith.constant 0 : index
    %52 = vector.load %arg5[%c40_36, %c0_37] : memref<48x128xf32, #tpu.memory_space<vmem>>, vector<8x128xf32>
    tpu.vector_store %arg5[%c40_36, %c0_37], %51 {strides = array<i32>} : memref<48x128xf32, #tpu.memory_space<vmem>>, vector<8x128xf32>,
    return
  }
  func.func @transform_0(%arg0: i32) -> (i32, i32) {
    %c0_i32 = arith.constant 0 : i32
    %c0_i32_0 = arith.constant 0 : i32
    return %arg0, %c0_i32 : i32, i32
  }
  func.func @transform_1(%arg0: i32) -> (i32, i32) {
    %c0_i32 = arith.constant 0 : i32
    %c0_i32_0 = arith.constant 0 : i32
    return %arg0, %c0_i32 : i32, i32
  }
  func.func @transform_2(%arg0: i32) -> (i32, i32) {
    %c0_i32 = arith.constant 0 : i32
    %c0_i32_0 = arith.constant 0 : i32
    return %arg0, %c0_i32 : i32, i32
  }
  func.func @transform_3(%arg0: i32) -> (i32, i32) {
    %c0_i32 = arith.constant 0 : i32
    %c0_i32_0 = arith.constant 0 : i32
    return %arg0, %c0_i32 : i32, i32
  }
  func.func @transform_4(%arg0: i32) -> (i32, i32) {
    %c0_i32 = arith.constant 0 : i32
    %c0_i32_0 = arith.constant 0 : i32
    %c0_i32_1 = arith.constant 0 : i32
    return %c0_i32, %c0_i32_0 : i32, i32
  }
}

</mosaic_0001>

<llo_original>
// kernel: tpu_custom_call.1
$region0: #{tpu_custom_call.1}
  #allocation0 [shape = 'u32[]', space=smem, size = 0x4, offset = 0x4, fixed_abs, tag = 'smem constant byte address 0x4 - core index']
  #allocation1 [shape = 'u32[144,128]{1,0:T(1,128)}', space=vmem, size = 0x12000, scoped, tag = 'internal scratch']
  %s0 = inlined_call_operand.hbm [shape: f32[16,128], index: 0, kind: input, shape index: {}]
  %s1 = inlined_call_operand.hbm [shape: f32[16,128], index: 1, kind: input, shape index: {}]
  %s2 = inlined_call_operand.hbm [shape: f32[16,128], index: 2, kind: input, shape index: {}]
  %s3 = inlined_call_operand.hbm [shape: f32[16,128], index: 3, kind: input, shape index: {}]
  %s4 = inlined_call_operand.hbm [shape: f32[48,128], index: 4, kind: output, shape index: {}]
  %s5 = sld [smem:[#allocation0]]
  $region46: #{tpu_custom_call.1} parent=0
    _
  %s7 = ssub.s32 1, %s5
  %s8 = scalar_select 0, %s7, %s5
  $region1: #{tpu_custom_call.1} parent=0
    #allocation2 [shape = 'u8[8192]{0}', space=vmem, size = 0x2000, scoped, tag = 'input window, operand 0, single buffered']
    #allocation3 [shape = 's32[1]{0}', space=sflag, size = 0x4, scoped, tag = 'scoped memory for tpu_custom_call.1']
    #allocation4 [shape = 's32[1]{0}', space=sflag, size = 0x4, scoped, tag = 'scoped memory for tpu_custom_call.1']
    #allocation5 [shape = 'u8[8192]{0}', space=vmem, size = 0x2000, scoped, tag = 'input window, operand 1, single buffered']
    #allocation6 [shape = 's32[1]{0}', space=sflag, size = 0x4, scoped, tag = 'scoped memory for tpu_custom_call.1']
    #allocation7 [shape = 'u8[8192]{0}', space=vmem, size = 0x2000, scoped, tag = 'input window, operand 2, single buffered']
    #allocation8 [shape = 'u8[8192]{0}', space=vmem, size = 0x2000, scoped, tag = 'input window, operand 3, single buffered']
    #allocation9 [shape = 's32[1]{0}', space=sflag, size = 0x4, scoped, tag = 'scoped memory for tpu_custom_call.1']
    #allocation10 [shape = 'u8[24576]{0}', space=vmem, size = 0x6000, scoped, tag = 'output window, operand 0, single buffered']
    %9 = vsyncpa [#allocation3], 0
    %10 = vsyncpa [#allocation6], 0
    %11 = vsyncpa [#allocation9], 0
    %12 = vsyncpa [#allocation4], 0
    // Predicated region
    $region2: #{tpu_custom_call.1} parent=1 // pred_check
      _
    $region3: #{tpu_custom_call.1} parent=1 // pred_check_branch
      %14 = sbr.rel (0) target = $region5
    $region4: #{tpu_custom_call.1} parent=1 // pred_region
      %s16 = ssub.s32 256, 256
      %17 = vsyncadd [#allocation3], %s16
      %s18 = sshll.u32 [#allocation2], 4
      %s19 = int_to_ptr.vmem [resolvable:$true] %s18
      %24 = dma.hbm_to_vmem [thread:$0]  %s0, 256, %s19, [#allocation3], 128, 128, 8
    $region5: #{tpu_custom_call.1} parent=1 // pred_fallthru
      _
    // Predicated region
    $region6: #{tpu_custom_call.1} parent=1 // pred_check
      _
    $region7: #{tpu_custom_call.1} parent=1 // pred_check_branch
      %26 = sbr.rel (0) target = $region9
    $region8: #{tpu_custom_call.1} parent=1 // pred_region
      %s28 = ssub.s32 256, 256
      %29 = vsyncadd [#allocation6], %s28
      %s30 = sshll.u32 [#allocation5], 4
      %s31 = int_to_ptr.vmem [resolvable:$true] %s30
      %36 = dma.hbm_to_vmem [thread:$0]  %s1, 256, %s31, [#allocation6], 128, 128, 8
    $region9: #{tpu_custom_call.1} parent=1 // pred_fallthru
      _
    // Predicated region
    $region10: #{tpu_custom_call.1} parent=1 // pred_check
      _
    $region11: #{tpu_custom_call.1} parent=1 // pred_check_branch
      %38 = sbr.rel (0) target = $region13
    $region12: #{tpu_custom_call.1} parent=1 // pred_region
      %s40 = ssub.s32 256, 256
      %41 = vsyncadd [#allocation6], %s40
      %s42 = sshll.u32 [#allocation7], 4
      %s43 = int_to_ptr.vmem [resolvable:$true] %s42
      %48 = dma.hbm_to_vmem [thread:$0]  %s2, 256, %s43, [#allocation6], 128, 128, 8
    $region13: #{tpu_custom_call.1} parent=1 // pred_fallthru
      _
    // Predicated region
    $region14: #{tpu_custom_call.1} parent=1 // pred_check
      _
    $region15: #{tpu_custom_call.1} parent=1 // pred_check_branch
      %50 = sbr.rel (0) target = $region17
    $region16: #{tpu_custom_call.1} parent=1 // pred_region
      %s52 = ssub.s32 256, 256
      %53 = vsyncadd [#allocation9], %s52
      %s54 = sshll.u32 [#allocation8], 4
      %s55 = int_to_ptr.vmem [resolvable:$true] %s54
      %60 = dma.hbm_to_vmem [thread:$0]  %s3, 256, %s55, [#allocation9], 128, 128, 8
    $region17: #{tpu_custom_call.1} parent=1 // pred_fallthru
      _
    // Predicated region
    $region18: #{tpu_custom_call.1} parent=1 // pred_check
      _
    $region19: #{tpu_custom_call.1} parent=1 // pred_check_branch
      %62 = sbr.rel (0) target = $region21
    $region20: #{tpu_custom_call.1} parent=1 // pred_region
      %63 = dma.done [#allocation3], 256
    $region21: #{tpu_custom_call.1} parent=1 // pred_fallthru
      _
    // Predicated region
    $region22: #{tpu_custom_call.1} parent=1 // pred_check
      _
    $region23: #{tpu_custom_call.1} parent=1 // pred_check_branch
      %65 = sbr.rel (0) target = $region25
    $region24: #{tpu_custom_call.1} parent=1 // pred_region
      %66 = dma.done [#allocation6], 256
    $region25: #{tpu_custom_call.1} parent=1 // pred_fallthru
      _
    // Predicated region
    $region26: #{tpu_custom_call.1} parent=1 // pred_check
      _
    $region27: #{tpu_custom_call.1} parent=1 // pred_check_branch
      %68 = sbr.rel (0) target = $region29
    $region28: #{tpu_custom_call.1} parent=1 // pred_region
      %69 = dma.done [#allocation6], 256
    $region29: #{tpu_custom_call.1} parent=1 // pred_fallthru
      _
    // Predicated region
    $region30: #{tpu_custom_call.1} parent=1 // pred_check
      _
    $region31: #{tpu_custom_call.1} parent=1 // pred_check_branch
      %71 = sbr.rel (0) target = $region33
    $region32: #{tpu_custom_call.1} parent=1 // pred_region
      %72 = dma.done [#allocation9], 256
    $region33: #{tpu_custom_call.1} parent=1 // pred_fallthru
      _
    %p73 = scmp.eq.s32.totalorder 0, 0
    // Predicated region
    $region34: #{tpu_custom_call.1} parent=1 // pred_check
      %p74 = pneg %p73
    $region35: #{tpu_custom_call.1} parent=1 // pred_check_branch
      %76 = sbr.rel (%p74) target = $region37
    $region36: #{tpu_custom_call.1} parent=1 // pred_region
      %77 = vst [vmem:[#allocation10] sm:$0xff] 0.0
      %78 = vst [vmem:[#allocation10 + $0x8] sm:$0xff] 0.0
      %79 = vst [vmem:[#allocation10 + $0x10] sm:$0xff] 0.0
      %80 = vst [vmem:[#allocation10 + $0x18] sm:$0xff] 0.0
      %81 = vst [vmem:[#allocation10 + $0x20] sm:$0xff] 0.0
      %82 = vst [vmem:[#allocation10 + $0x28] sm:$0xff] 0.0
    $region37: #{tpu_custom_call.1} parent=1 // pred_fallthru
      _
    %v83 = vld [vmem:[#allocation2] sm:$0xff]
    %v84 = vld [vmem:[#allocation2 + $0x8] sm:$0xff]
    %v85 = vmul.f32 %v83, 0.5
    %v86 = vmul.f32 %v84, 0.5
    %v87 = vtanh.pop %v85
    %v88 = vtanh.pop %v86
    %v89 = vadd.f32 %v87, 1.0
    %v90 = vadd.f32 %v88, 1.0
    %v91 = vmul.f32 %v89, 0.5
    %v92 = vmul.f32 %v90, 0.5
    %v93 = vld [vmem:[#allocation5] sm:$0xff]
    %v94 = vld [vmem:[#allocation5 + $0x8] sm:$0xff]
    %v95 = vld [vmem:[#allocation7] sm:$0xff]
    %v96 = vld [vmem:[#allocation7 + $0x8] sm:$0xff]
    %v97 = vmul.f32 %v95, 0.5
    %v98 = vmul.f32 %v96, 0.5
    %v99 = vtanh.pop %v97
    %v100 = vtanh.pop %v98
    %v101 = vadd.f32 %v99, 1.0
    %v102 = vadd.f32 %v100, 1.0
    %v103 = vmul.f32 %v101, 0.5
    %v104 = vmul.f32 %v102, 0.5
    %v105 = vld [vmem:[#allocation8] sm:$0xff]
    %v106 = vld [vmem:[#allocation8 + $0x8] sm:$0xff]
    %v107 = vld [vmem:[#allocation10] sm:$0xff]
    %v108 = vmul.f32 %v91, %v93
    %v109 = vmul.f32 %v92, %v94
    %v110 = vadd.f32 %v108, %v109
    %v111 = vadd.f32 %v107, %v110
    %112 = vst [vmem:[#allocation10] sm:$0xff] %v111
    %v113 = vld [vmem:[#allocation10 + $0x8] sm:$0xff]
    %v114 = vadd.f32 %v91, %v92
    %v115 = vadd.f32 %v113, %v114
    %116 = vst [vmem:[#allocation10 + $0x8] sm:$0xff] %v115
    %v117 = vld [vmem:[#allocation10 + $0x10] sm:$0xff]
    %v118 = vadd.f32 %v93, %v94
    %v119 = vadd.f32 %v117, %v118
    %120 = vst [vmem:[#allocation10 + $0x10] sm:$0xff] %v119
    %v121 = vld [vmem:[#allocation10 + $0x18] sm:$0xff]
    %v122 = vmul.f32 %v103, %v105
    %v123 = vmul.f32 %v104, %v106
    %v124 = vadd.f32 %v122, %v123
    %v125 = vadd.f32 %v121, %v124
    %126 = vst [vmem:[#allocation10 + $0x18] sm:$0xff] %v125
    %v127 = vld [vmem:[#allocation10 + $0x20] sm:$0xff]
    %v128 = vadd.f32 %v103, %v104
    %v129 = vadd.f32 %v127, %v128
    %130 = vst [vmem:[#allocation10 + $0x20] sm:$0xff] %v129
    %v131 = vld [vmem:[#allocation10 + $0x28] sm:$0xff]
    %v132 = vadd.f32 %v105, %v106
    %v133 = vadd.f32 %v131, %v132
    %134 = vst [vmem:[#allocation10 + $0x28] sm:$0xff] %v133
    // Predicated region
    $region38: #{tpu_custom_call.1} parent=1 // pred_check
      _
    $region39: #{tpu_custom_call.1} parent=1 // pred_check_branch
      %136 = sbr.rel (0) target = $region41
    $region40: #{tpu_custom_call.1} parent=1 // pred_region
      %s138 = ssub.s32 768, 768
      %139 = vsyncadd [#allocation4], %s138
      %s140 = sshll.u32 [#allocation10], 4
      %s141 = int_to_ptr.vmem [resolvable:$true] %s140
      %146 = dma.vmem_to_hbm [thread:$0]  %s141, 768, %s4, [#allocation4], 128, 128, 8
    $region41: #{tpu_custom_call.1} parent=1 // pred_fallthru
      _
    // Predicated region
    $region42: #{tpu_custom_call.1} parent=1 // pred_check
      _
    $region43: #{tpu_custom_call.1} parent=1 // pred_check_branch
      %148 = sbr.rel (0) target = $region45
    $region44: #{tpu_custom_call.1} parent=1 // pred_region
      %149 = dma.done [#allocation4], 768
    $region45: #{tpu_custom_call.1} parent=1 // pred_fallthru
      _
    %150 = vsyncpa [#allocation3], 1
    %151 = vsyncpa [#allocation6], 1
    %152 = vsyncpa [#allocation9], 1
    %153 = vsyncpa [#allocation4], 1

</llo_original>
